<compile_context>
chip_gen: v5e
topology: v5e:2x2
jax: 0.10.0
libtpu: 0.0.40
codegen_flags: <defaults>
</compile_context>

<pallas_src>
import jax
import jax.numpy as jnp
from jax import lax
from jax.experimental import pallas as pl
from jax.experimental.pallas import tpu as pltpu

# ----- small, forward-consistent shapes ------------------------------------
B, C_IN, H, W = 2, 4, 14, 14        # images: (B, C_in, 14, 14)
C_OUT = 32                          # backbone feature channels
KH = KW = 3
STRIDE = 2
PAD = 1
H_OUT = (H + 2 * PAD - KH) // STRIDE + 1   # 7
W_OUT = (W + 2 * PAD - KW) // STRIDE + 1   # 7  -> AvgPool2d(7,1,0) gives 1x1
N_PATCH = H_OUT * W_OUT                    # 49
K_DIM = C_IN * KH * KW                     # 36

# ----- TPU-friendly padded sizes (lane-dense / sublane-aligned) --------------
LANE = 128
SUBLANE = 8
N_PAD = ((N_PATCH + SUBLANE - 1) // SUBLANE) * SUBLANE   # 56 rows per image
K_PAD = LANE                                             # 128 contraction lanes
C_PAD = LANE                                             # 128 output lanes
ROWS = B * N_PAD                                         # 112 rows, whole batch
AVG_ROWS = ((B + SUBLANE - 1) // SUBLANE) * SUBLANE      # 8 (>= B, sublane tile)


# ----- Pallas kernel: batch-wide conv-as-matmul + ReLU + fused avg pool ------
def visual_extractor_kernel(patch_ref, w_ref, b_ref, pool_ref, feat_ref, avg_ref):
    # Single invocation, whole batch resident in VMEM:
    #   patch_ref: (ROWS, K_PAD)      bf16 zero-padded im2col rows (all images)
    #   w_ref:     (K_PAD, C_PAD)     bf16 zero-padded conv weights (OIHW -> KxC)
    #   b_ref:     (1, C_PAD)         f32 zero-padded conv bias
    #   pool_ref:  (AVG_ROWS, ROWS)   bf16 pooling matrix (row b = 1/49 on image
    #                                 b's real rows, pad rows/images are zero)
    #   feat_ref:  (ROWS, C_PAD)      f32 post-ReLU backbone patch features
    #   avg_ref:   (AVG_ROWS, C_PAD)  f32 rows 0..B-1 = AvgPool2d(7,1,0) result
    y = jnp.dot(patch_ref[...], w_ref[...], preferred_element_type=jnp.float32)
    y = jnp.maximum(y + b_ref[...], 0.0)           # bias + ReLU on f32 accum
    feat_ref[...] = y
    # Fused average pool as a second (bf16 x bf16 -> f32) MXU matmul; the pool
    # matrix zeroes the pad rows (which hold relu(bias)) and divides by 49.
    avg_ref[...] = jnp.dot(pool_ref[...], y.astype(jnp.bfloat16),
                           preferred_element_type=jnp.float32)


# ----- glue: im2col + parameter padding --------------------------------------
def im2col_padded(x_nchw):
    xp = jnp.pad(x_nchw, ((0, 0), (0, 0), (PAD, PAD), (PAD, PAD)))
    cols = []
    for kh in range(KH):
        for kw in range(KW):
            cols.append(
                xp[:, :, kh:kh + STRIDE * H_OUT:STRIDE, kw:kw + STRIDE * W_OUT:STRIDE]
            )
    pat = jnp.stack(cols, axis=-1)            # (B, C_in, 7, 7, KH*KW)
    pat = pat.transpose(0, 2, 3, 1, 4)        # (B, 7, 7, C_in, KH*KW)
    pat = pat.reshape(B, N_PATCH, K_DIM)      # row layout: c_in-major, then kh,kw
    pat = jnp.pad(pat, ((0, 0), (0, N_PAD - N_PATCH), (0, K_PAD - K_DIM)))
    return pat.reshape(ROWS, K_PAD).astype(jnp.bfloat16)   # (112, 128) bf16


@jax.jit
def visual_extractor(images, conv_w, conv_b):
    """images: (B, C_in, H, W) NCHW float32.
    Returns (patch_feats (B, 49, C_OUT), avg_feats (B, C_OUT))."""
    patches = im2col_padded(images)                                   # (112, 128) bf16
    w_mat = conv_w.reshape(C_OUT, K_DIM).T                            # (36, 32)
    w_mat = jnp.pad(w_mat, ((0, K_PAD - K_DIM), (0, C_PAD - C_OUT)))  # (128, 128)
    w_mat = w_mat.astype(jnp.bfloat16)
    b_mat = jnp.pad(conv_b.reshape(1, C_OUT),
                    ((0, 0), (0, C_PAD - C_OUT))).astype(jnp.float32)  # (1, 128)

    # Batch-wide pooling matrix: row b averages image b's 49 real rows.
    pool = jnp.zeros((AVG_ROWS, ROWS), jnp.float32)
    for b in range(B):
        pool = pool.at[b, b * N_PAD:b * N_PAD + N_PATCH].set(1.0 / N_PATCH)
    pool = pool.astype(jnp.bfloat16)                                   # (8, 112)

    flops = 2 * ROWS * K_PAD * C_PAD + 2 * AVG_ROWS * ROWS * C_PAD
    bytes_accessed = (2 * (patches.size + w_mat.size + pool.size)      # bf16 in
                      + 4 * b_mat.size                                 # f32 in
                      + 4 * (ROWS * C_PAD + AVG_ROWS * C_PAD))         # f32 out

    # Single invocation, no grid: every operand/result is a whole-array VMEM
    # block (no pipelining, no double-buffer slots for invariant operands).
    feat_pad, avg_pad = pl.pallas_call(
        visual_extractor_kernel,
        out_shape=(
            jax.ShapeDtypeStruct((ROWS, C_PAD), jnp.float32),
            jax.ShapeDtypeStruct((AVG_ROWS, C_PAD), jnp.float32),
        ),
        cost_estimate=pl.CostEstimate(
            flops=flops, transcendentals=0, bytes_accessed=bytes_accessed),
    )(patches, w_mat, b_mat, pool)

    # RAM (see TODO above): (B, C, H'*W') -> (B, H'*W', C); drop row/lane padding
    patch_feats = feat_pad.reshape(B, N_PAD, C_PAD)[:, :N_PATCH, :C_OUT]
    # avg_fnt(...).squeeze().reshape(-1, C): pooled map is 1x1 -> identity reshape
    avg_feats = avg_pad[:B, :C_OUT]
    return patch_feats, avg_feats


if __name__ == "__main__":
    key = jax.random.PRNGKey(0)
    k_img, k_w, k_b = jax.random.split(key, 3)
    images = jax.random.normal(k_img, (B, C_IN, H, W), dtype=jnp.float32)
    conv_w = jax.random.normal(k_w, (C_OUT, C_IN, KH, KW), dtype=jnp.float32) * 0.1
    conv_b = jax.random.normal(k_b, (C_OUT,), dtype=jnp.float32) * 0.1

    patch_feats, avg_feats = visual_extractor(images, conv_w, conv_b)
    jax.block_until_ready((patch_feats, avg_feats))

    # plain-JAX f32 reference for sanity (kernel uses bf16 MXU operands, so the
    # tolerance reflects bf16 operand rounding with f32 accumulation).
    ref = lax.conv_general_dilated(
        images, conv_w, (STRIDE, STRIDE), ((PAD, PAD), (PAD, PAD)),
        dimension_numbers=("NCHW", "OIHW", "NCHW"))
    ref = jax.nn.relu(ref + conv_b[None, :, None, None])          # (B, C, 7, 7)
    ref_avg = ref.mean(axis=(2, 3))                                # (B, C)
    ref_patch = ref.reshape(B, C_OUT, -1).transpose(0, 2, 1)       # (B, 49, C)

    assert patch_feats.shape == (B, N_PATCH, C_OUT)
    assert avg_feats.shape == (B, C_OUT)
    assert jnp.allclose(patch_feats, ref_patch, atol=2e-2, rtol=2e-2)
    assert jnp.allclose(avg_feats, ref_avg, atol=2e-2, rtol=2e-2)

    print("KERNEL_OK")
</pallas_src>

<mosaic_0001>
module attributes {stable_mosaic.version = 11 : i64} {
  func.func @visual_extractor_kernel(%arg0: memref<112x128xbf16, #tpu.memory_space<vmem>>, %arg1: memref<128x128xbf16, #tpu.memory_space<vmem>>, %arg2: memref<1x128xf32, #tpu.memory_space<vmem>>, %arg3: memref<8x112xbf16, #tpu.memory_space<vmem>>, %arg4: memref<112x128xf32, #tpu.memory_space<vmem>>, %arg5: memref<8x128xf32, #tpu.memory_space<vmem>>) attributes {dimension_semantics = [], scalar_prefetch = 0 : i64, scratch_operands = 0 : i64, tpu.core_type = #tpu.core_type<tc>} {
    %c0 = arith.constant 0 : index
    %c0_0 = arith.constant 0 : index
    %0 = vector.load %arg0[%c0, %c0_0] : memref<112x128xbf16, #tpu.memory_space<vmem>>, vector<112x128xbf16>
    %c0_1 = arith.constant 0 : index
    %c0_2 = arith.constant 0 : index
    %1 = vector.load %arg1[%c0_1, %c0_2] : memref<128x128xbf16, #tpu.memory_space<vmem>>, vector<128x128xbf16>
    %cst = arith.constant dense<0.000000e+00> : vector<112x128xf32>
    %2 = tpu.matmul %0, %1, %cst {dimension_numbers = #tpu.dot_dimension_numbers<[1], [0], [0], [1], [0, 0, 1, 1], [], []>} : vector<112x128xbf16>, vector<128x128xbf16>, vector<112x128xf32> -> vector<112x128xf32>
    %c0_3 = arith.constant 0 : index
    %c0_4 = arith.constant 0 : index
    %3 = vector.load %arg2[%c0_3, %c0_4] : memref<1x128xf32, #tpu.memory_space<vmem>>, vector<1x128xf32>
    %4 = vector.broadcast %3 : vector<1x128xf32> to vector<112x128xf32>
    %5 = arith.addf %2, %4 : vector<112x128xf32>
    %cst_5 = arith.constant 0.000000e+00 : f32
    %6 = vector.broadcast %cst_5 : f32 to vector<112x128xf32>
    %7 = arith.maximumf %5, %6 : vector<112x128xf32>
    %c0_6 = arith.constant 0 : index
    %c0_7 = arith.constant 0 : index
    %8 = vector.load %arg4[%c0_6, %c0_7] : memref<112x128xf32, #tpu.memory_space<vmem>>, vector<112x128xf32>
    tpu.vector_store %arg4[%c0_6, %c0_7], %7 {strides = array<i32>} : memref<112x128xf32, #tpu.memory_space<vmem>>, vector<112x128xf32>,
    %c0_8 = arith.constant 0 : index
    %c0_9 = arith.constant 0 : index
    %9 = vector.load %arg3[%c0_8, %c0_9] : memref<8x112xbf16, #tpu.memory_space<vmem>>, vector<8x112xbf16>
    %10 = arith.truncf %7 : vector<112x128xf32> to vector<112x128xbf16>
    %cst_10 = arith.constant dense<0.000000e+00> : vector<8x128xf32>
    %11 = tpu.matmul %9, %10, %cst_10 {dimension_numbers = #tpu.dot_dimension_numbers<[1], [0], [0], [1], [0, 0, 1, 1], [], []>} : vector<8x112xbf16>, vector<112x128xbf16>, vector<8x128xf32> -> vector<8x128xf32>
    %c0_11 = arith.constant 0 : index
    %c0_12 = arith.constant 0 : index
    %12 = vector.load %arg5[%c0_11, %c0_12] : memref<8x128xf32, #tpu.memory_space<vmem>>, vector<8x128xf32>
    tpu.vector_store %arg5[%c0_11, %c0_12], %11 {strides = array<i32>} : memref<8x128xf32, #tpu.memory_space<vmem>>, vector<8x128xf32>,
    return
  }
}

</mosaic_0001>

<llo_original>
// kernel: visual_extractor.1
$region0: #{visual_extractor.1}
  #allocation0 [shape = 'u32[]', space=smem, size = 0x4, offset = 0x4, fixed_abs, tag = 'smem constant byte address 0x4 - core index']
  #allocation1 [shape = 'u32[72,128]{1,0:T(1,128)}', space=vmem, size = 0x9000, scoped, tag = 'internal scratch']
  %s0 = inlined_call_operand.vmem [shape: bf16[112,128], index: 0, kind: input, shape index: {}]
  %s1 = inlined_call_operand.vmem [shape: bf16[128,128], index: 1, kind: input, shape index: {}]
  %s2 = inlined_call_operand.vmem [shape: f32[1,128], index: 2, kind: input, shape index: {}]
  %s3 = inlined_call_operand.vmem [shape: bf16[8,112], index: 3, kind: input, shape index: {}]
  %s4 = inlined_call_operand.vmem [shape: f32[112,128], index: 4, kind: output, shape index: {0}]
  %s5 = inlined_call_operand.vmem [shape: f32[8,128], index: 5, kind: output, shape index: {1}]
  %6 = xla_tuple %s4, %s5
  %s7 = sld [smem:[#allocation0]]
  $region34: #{visual_extractor.1} parent=0
    _
  %s9 = ssub.s32 1, %s7
  %s10 = scalar_select 0, %s9, %s7
  // Predicated region
  $region2: #{visual_extractor.1} parent=0 // pred_check
    _
  $region3: #{visual_extractor.1} parent=0 // pred_check_branch
    %12 = sbr.rel (0) target = $region5
  $region4: #{visual_extractor.1} parent=0 // pred_region
    _
  $region5: #{visual_extractor.1} parent=0 // pred_fallthru
    _
  // Predicated region
  $region6: #{visual_extractor.1} parent=0 // pred_check
    _
  $region7: #{visual_extractor.1} parent=0 // pred_check_branch
    %14 = sbr.rel (0) target = $region9
  $region8: #{visual_extractor.1} parent=0 // pred_region
    _
  $region9: #{visual_extractor.1} parent=0 // pred_fallthru
    _
  // Predicated region
  $region10: #{visual_extractor.1} parent=0 // pred_check
    _
  $region11: #{visual_extractor.1} parent=0 // pred_check_branch
    %16 = sbr.rel (0) target = $region13
  $region12: #{visual_extractor.1} parent=0 // pred_region
    _
  $region13: #{visual_extractor.1} parent=0 // pred_fallthru
    _
  // Predicated region
  $region14: #{visual_extractor.1} parent=0 // pred_check
    _
  $region15: #{visual_extractor.1} parent=0 // pred_check_branch
    %18 = sbr.rel (0) target = $region17
  $region16: #{visual_extractor.1} parent=0 // pred_region
    _
  $region17: #{visual_extractor.1} parent=0 // pred_fallthru
    _
  %v20 = vld [vmem:[%s0] sm:$0xf]
  %v21 = vld [vmem:[%s0 + $0x4] sm:$0xf]
  %v22 = vld [vmem:[%s0 + $0x8] sm:$0xf]
  %v23 = vld [vmem:[%s0 + $0xc] sm:$0xf]
  %v24 = vld [vmem:[%s0 + $0x10] sm:$0xf]
  %v25 = vld [vmem:[%s0 + $0x14] sm:$0xf]
  %v26 = vld [vmem:[%s0 + $0x18] sm:$0xf]
  %v27 = vld [vmem:[%s0 + $0x1c] sm:$0xf]
  %v28 = vld [vmem:[%s0 + $0x20] sm:$0xf]
  %v29 = vld [vmem:[%s0 + $0x24] sm:$0xf]
  %v30 = vld [vmem:[%s0 + $0x28] sm:$0xf]
  %v31 = vld [vmem:[%s0 + $0x2c] sm:$0xf]
  %v32 = vld [vmem:[%s0 + $0x30] sm:$0xf]
  %v33 = vld [vmem:[%s0 + $0x34] sm:$0xf]
  %v34 = vld [vmem:[%s1] sm:$0xf]
  %v35 = vld [vmem:[%s1 + $0x4] sm:$0xf]
  %v36 = vld [vmem:[%s1 + $0x8] sm:$0xf]
  %v37 = vld [vmem:[%s1 + $0xc] sm:$0xf]
  %v38 = vld [vmem:[%s1 + $0x10] sm:$0xf]
  %v39 = vld [vmem:[%s1 + $0x14] sm:$0xf]
  %v40 = vld [vmem:[%s1 + $0x18] sm:$0xf]
  %v41 = vld [vmem:[%s1 + $0x1c] sm:$0xf]
  %v42 = vld [vmem:[%s1 + $0x20] sm:$0xf]
  %v43 = vld [vmem:[%s1 + $0x24] sm:$0xf]
  %v44 = vld [vmem:[%s1 + $0x28] sm:$0xf]
  %v45 = vld [vmem:[%s1 + $0x2c] sm:$0xf]
  %v46 = vld [vmem:[%s1 + $0x30] sm:$0xf]
  %v47 = vld [vmem:[%s1 + $0x34] sm:$0xf]
  %v48 = vld [vmem:[%s1 + $0x38] sm:$0xf]
  %v49 = vld [vmem:[%s1 + $0x3c] sm:$0xf]
  %v50 = vld [vmem:[%s2] sm:$0x1]
  %v52 = vperm.slane %v50, 0
  %v68 = vunpack.c.l.b16 %v20
  %v69 = vunpack.c.l.b16 %v21
  %v70 = vunpack.c.l.b16 %v22
  %v71 = vunpack.c.l.b16 %v23
  %v72 = vunpack.c.l.b16 %v24
  %v73 = vunpack.c.l.b16 %v25
  %v74 = vunpack.c.l.b16 %v26
  %v75 = vunpack.c.l.b16 %v27
  %v76 = vunpack.c.l.b16 %v28
  %v77 = vunpack.c.l.b16 %v29
  %v78 = vunpack.c.l.b16 %v30
  %v79 = vunpack.c.l.b16 %v31
  %v80 = vunpack.c.l.b16 %v32
  %v81 = vunpack.c.l.b16 %v33
  %v82 = vpack.c.b16 %v69, %v68
  %v83 = vpack.c.b16 %v71, %v70
  %v84 = vpack.c.b16 %v73, %v72
  %v85 = vpack.c.b16 %v75, %v74
  %v86 = vpack.c.b16 %v77, %v76
  %v87 = vpack.c.b16 %v79, %v78
  %v88 = vpack.c.b16 %v81, %v80
  %v112 = vunpack.c.l.b16 %v34
  %v113 = vunpack.c.l.b16 %v35
  %v114 = vunpack.c.l.b16 %v36
  %v115 = vunpack.c.l.b16 %v37
  %v116 = vunpack.c.l.b16 %v38
  %v117 = vunpack.c.l.b16 %v39
  %v118 = vunpack.c.l.b16 %v40
  %v119 = vunpack.c.l.b16 %v41
  %v120 = vunpack.c.l.b16 %v42
  %v121 = vunpack.c.l.b16 %v43
  %v122 = vunpack.c.l.b16 %v44
  %v123 = vunpack.c.l.b16 %v45
  %v124 = vunpack.c.l.b16 %v46
  %v125 = vunpack.c.l.b16 %v47
  %v126 = vunpack.c.l.b16 %v48
  %v127 = vunpack.c.l.b16 %v49
  %v128 = vpack.c.b16 %v113, %v112
  %v129 = vpack.c.b16 %v115, %v114
  %v130 = vpack.c.b16 %v117, %v116
  %v131 = vpack.c.b16 %v119, %v118
  %v132 = vpack.c.b16 %v121, %v120
  %v133 = vpack.c.b16 %v123, %v122
  %v134 = vpack.c.b16 %v125, %v124
  %v135 = vpack.c.b16 %v127, %v126
  %144 = vmatpush.bf16.msra.mxu0 %v135
  %145 = vmatpush.bf16.msra.mxu0 %v134
  %146 = vmatpush.bf16.msra.mxu0 %v133
  %147 = vmatpush.bf16.msra.mxu0 %v132
  %148 = vmatpush.bf16.msra.mxu0 %v131
  %149 = vmatpush.bf16.msra.mxu0 %v130
  %150 = vmatpush.bf16.msra.mxu0 %v129
  %151 = vmatpush.bf16.msra.mxu0 %v128
  %152 = vmatmul.bf16.gmra.mxu0 %v82
  %v153 = vpop.f32.mrf.mxu0
  %v154 = vadd.f32 %v52, %v153
  %v155 = vpop.f32.mrf.mxu0
  %v156 = vadd.f32 %v52, %v155
  %157 = vmatmul.bf16.gmra.mxu0 %v83
  %v158 = vpop.f32.mrf.mxu0
  %v159 = vadd.f32 %v52, %v158
  %v160 = vpop.f32.mrf.mxu0
  %v161 = vadd.f32 %v52, %v160
  %162 = vmatmul.bf16.gmra.mxu0 %v84
  %v163 = vpop.f32.mrf.mxu0
  %v164 = vadd.f32 %v52, %v163
  %v165 = vpop.f32.mrf.mxu0
  %v166 = vadd.f32 %v52, %v165
  %167 = vmatmul.bf16.gmra.mxu0 %v85
  %v168 = vpop.f32.mrf.mxu0
  %v169 = vadd.f32 %v52, %v168
  %v170 = vpop.f32.mrf.mxu0
  %v171 = vadd.f32 %v52, %v170
  %172 = vmatmul.bf16.gmra.mxu0 %v86
  %v173 = vpop.f32.mrf.mxu0
  %v174 = vadd.f32 %v52, %v173
  %v175 = vpop.f32.mrf.mxu0
  %v176 = vadd.f32 %v52, %v175
  %177 = vmatmul.bf16.gmra.mxu0 %v87
  %v178 = vpop.f32.mrf.mxu0
  %v179 = vadd.f32 %v52, %v178
  %v180 = vpop.f32.mrf.mxu0
  %v181 = vadd.f32 %v52, %v180
  %182 = vmatmul.bf16.gmra.mxu0 %v88
  %v183 = vpop.f32.mrf.mxu0
  %v184 = vadd.f32 %v52, %v183
  %v185 = vpop.f32.mrf.mxu0
  %v186 = vadd.f32 %v52, %v185
  %187 = vdwg.mxu0
  %v188 = vmax.f32 %v154, 0.0
  %v189 = vmax.f32 %v156, 0.0
  %v190 = vmax.f32 %v159, 0.0
  %v191 = vmax.f32 %v161, 0.0
  %v192 = vmax.f32 %v164, 0.0
  %v193 = vmax.f32 %v166, 0.0
  %v194 = vmax.f32 %v169, 0.0
  %v195 = vmax.f32 %v171, 0.0
  %v196 = vmax.f32 %v174, 0.0
  %v197 = vmax.f32 %v176, 0.0
  %v198 = vmax.f32 %v179, 0.0
  %v199 = vmax.f32 %v181, 0.0
  %v200 = vmax.f32 %v184, 0.0
  %v201 = vmax.f32 %v186, 0.0
  %202 = vst [vmem:[%s4] sm:$0xff] %v188
  %203 = vst [vmem:[%s4 + $0x8] sm:$0xff] %v189
  %204 = vst [vmem:[%s4 + $0x10] sm:$0xff] %v190
  %205 = vst [vmem:[%s4 + $0x18] sm:$0xff] %v191
  %206 = vst [vmem:[%s4 + $0x20] sm:$0xff] %v192
  %207 = vst [vmem:[%s4 + $0x28] sm:$0xff] %v193
  %208 = vst [vmem:[%s4 + $0x30] sm:$0xff] %v194
  %209 = vst [vmem:[%s4 + $0x38] sm:$0xff] %v195
  %210 = vst [vmem:[%s4 + $0x40] sm:$0xff] %v196
  %211 = vst [vmem:[%s4 + $0x48] sm:$0xff] %v197
  %212 = vst [vmem:[%s4 + $0x50] sm:$0xff] %v198
  %213 = vst [vmem:[%s4 + $0x58] sm:$0xff] %v199
  %214 = vst [vmem:[%s4 + $0x60] sm:$0xff] %v200
  %215 = vst [vmem:[%s4 + $0x68] sm:$0xff] %v201
  %v216 = vld [vmem:[%s3] sm:$0xf]
  %v217 = vpack.c.bf16 %v189, %v188
  %v218 = vpack.c.bf16 %v191, %v190
  %v219 = vpack.c.bf16 %v193, %v192
  %v220 = vpack.c.bf16 %v195, %v194
  %v221 = vpack.c.bf16 %v197, %v196
  %v222 = vpack.c.bf16 %v199, %v198
  %v223 = vpack.c.bf16 %v201, %v200
  %vm224 = vcmask 916480
  %v226 = vsel %vm224, %v216, 0
  %228 = vmatpush.bf16.msra.mxu0 0
  %229 = vmatpush.bf16.msra.mxu0 %v223
  %230 = vmatpush.bf16.msra.mxu0 %v222
  %231 = vmatpush.bf16.msra.mxu0 %v221
  %232 = vmatpush.bf16.msra.mxu0 %v220
  %233 = vmatpush.bf16.msra.mxu0 %v219
  %234 = vmatpush.bf16.msra.mxu0 %v218
  %235 = vmatpush.bf16.msra.mxu0 %v217
  %236 = vmatmul.bf16.gmra.mxu0 %v226
  %v237 = vpop.f32.mrf.mxu0
  %v238 = vadd.f32 0.0, %v237
  %v239 = vpop.f32.mrf.mxu0
  %240 = vdwg.mxu0
  %241 = vst [vmem:[%s5] sm:$0xff] %v238
  // Predicated region
  $region18: #{visual_extractor.1} parent=0 // pred_check
    _
  $region19: #{visual_extractor.1} parent=0 // pred_check_branch
    %243 = sbr.rel (0) target = $region21
  $region20: #{visual_extractor.1} parent=0 // pred_region
    _
  $region21: #{visual_extractor.1} parent=0 // pred_fallthru
    _
  // Predicated region
  $region22: #{visual_extractor.1} parent=0 // pred_check
    _
  $region23: #{visual_extractor.1} parent=0 // pred_check_branch
    %245 = sbr.rel (0) target = $region25
  $region24: #{visual_extractor.1} parent=0 // pred_region
    _
  $region25: #{visual_extractor.1} parent=0 // pred_fallthru
    _
  // Predicated region
  $region26: #{visual_extractor.1} parent=0 // pred_check
    _
  $region27: #{visual_extractor.1} parent=0 // pred_check_branch
    %247 = sbr.rel (0) target = $region29
  $region28: #{visual_extractor.1} parent=0 // pred_region
    _
  $region29: #{visual_extractor.1} parent=0 // pred_fallthru
    _
  // Predicated region
  $region30: #{visual_extractor.1} parent=0 // pred_check
    _
  $region31: #{visual_extractor.1} parent=0 // pred_check_branch
    %249 = sbr.rel (0) target = $region33
  $region32: #{visual_extractor.1} parent=0 // pred_region
    _
  $region33: #{visual_extractor.1} parent=0 // pred_fallthru
    _

</llo_original>
